<compile_context>
chip_gen: v5e
topology: v5e:2x2
jax: 0.10.0
libtpu: 0.0.40
codegen_flags: <defaults>
</compile_context>

<pallas_src>
import functools

import jax
import jax.numpy as jnp
from jax.experimental import pallas as pl
from jax.experimental.pallas import tpu as pltpu

EPS = 1e-5
NEG_SLOPE = 0.01        # torch.nn.LeakyReLU default
LANES = 128             # vreg lane width / v5e MXU tile
SUBLANE_BF16 = 16       # bf16 packs 16 rows per sublane tile


def _round_up(n, m):
    return (n + m - 1) // m * m


# --------------------------------------------------------------------------
# Kernel
# --------------------------------------------------------------------------
def dnn_kernel(x_ref, w1_ref, w2_ref, w3_ref, gb_ref, o_ref):
    """fc1->bn1->lrelu -> fc2->bn2->lrelu -> fc3->bn3->sigmoid (all VMEM-resident).

    x_ref : [B, Kin]  f32   (true input width; cast to bf16 at the dot)
    w1_ref: [Kin, P]  bf16  (Linear biases folded away by training-mode BN)
    w2_ref, w3_ref: [P, P] bf16
    gb_ref: [6, P]    f32   (gamma1, beta1, gamma2, beta2, gamma3, beta3)
    o_ref : [B, P]    f32   (lane-dense; wrapper slices to output_size under jit)
    """
    gb = gb_ref[...]

    def bn(h, g, b):
        # Training-mode BatchNorm1d: one-pass batch stats (biased variance),
        # folded into a single scale/shift so the apply is one mul + one add.
        inv_n = 1.0 / h.shape[0]
        mean = jnp.sum(h, axis=0, keepdims=True) * inv_n
        ex2 = jnp.sum(h * h, axis=0, keepdims=True) * inv_n
        var = jnp.maximum(ex2 - mean * mean, 0.0)
        scale = g * jax.lax.rsqrt(var + EPS)
        shift = b - mean * scale
        return h * scale + shift

    def leaky(h):
        return jnp.where(h >= 0, h, NEG_SLOPE * h)

    # fc1 -> bn1 -> leaky_relu
    h = jnp.dot(x_ref[...].astype(jnp.bfloat16), w1_ref[...],
                preferred_element_type=jnp.float32)
    h = leaky(bn(h, gb[0:1], gb[1:2]))

    # fc2 -> bn2 -> leaky_relu
    h = jnp.dot(h.astype(jnp.bfloat16), w2_ref[...],
                preferred_element_type=jnp.float32)
    h = leaky(bn(h, gb[2:3], gb[3:4]))

    # fc3 -> bn3 -> sigmoid
    h = jnp.dot(h.astype(jnp.bfloat16), w3_ref[...],
                preferred_element_type=jnp.float32)
    h = bn(h, gb[4:5], gb[5:6])

    # sigmoid(h) = 0.5 * (tanh(h/2) + 1): a single EUP push, no approx error.
    o_ref[...] = (0.5 * (jnp.tanh(0.5 * h) + 1.0)).astype(o_ref.dtype)


# --------------------------------------------------------------------------
# Wrapper (jit-fused pad -> pallas_call -> slice)
# --------------------------------------------------------------------------
@functools.partial(jax.jit, static_argnums=(5, 6))
def _forward_jit(x, w1p, w2p, w3p, gbp, kin, out_size):
    B = x.shape[0]
    P = w2p.shape[0]
    if x.shape[1] != kin:
        # Static-shape decision; the pad (if any) fuses into this jit.
        x = jnp.pad(x, ((0, 0), (0, kin - x.shape[1])))

    vmem = pl.BlockSpec(memory_space=pltpu.MemorySpace.VMEM)
    out = pl.pallas_call(
        dnn_kernel,
        in_specs=[vmem, vmem, vmem, vmem, vmem],
        out_specs=vmem,
        out_shape=jax.ShapeDtypeStruct((B, P), jnp.float32),
    )(x, w1p, w2p, w3p, gbp)
    # Padded lanes hold sigmoid(0) = 0.5; slice them off inside the same jit.
    return out[:, :out_size]


def dnn_forward(x, params):
    """x: [B, input_size] f32 -> [B, output_size] f32."""
    return _forward_jit(x, params["w1p"], params["w2p"], params["w3p"],
                        params["gbp"], params["Kin"], params["out_size"])


# --------------------------------------------------------------------------
# Params
# --------------------------------------------------------------------------
def init_params(key, input_size, hidden_size, output_size):
    """Deterministic synthetic init matching the PyTorch module's shapes.

    Returns the f32 'logical' params (PyTorch view, used by the reference) and
    the padded / packed / bf16 kernel-side copies.
    """
    ks = jax.random.split(key, 6)

    def linear(kw, kb, fan_in, fan_out):
        bound = 1.0 / jnp.sqrt(fan_in)
        w = jax.random.uniform(kw, (fan_in, fan_out), jnp.float32, -bound, bound)
        b = jax.random.uniform(kb, (1, fan_out), jnp.float32, -bound, bound)
        return w, b

    w1, b1 = linear(ks[0], ks[1], input_size, hidden_size)
    w2, b2 = linear(ks[2], ks[3], hidden_size, hidden_size)
    w3, b3 = linear(ks[4], ks[5], hidden_size, output_size)

    ones = lambda n: jnp.ones((1, n), jnp.float32)
    zeros = lambda n: jnp.zeros((1, n), jnp.float32)
    g1, be1 = ones(hidden_size), zeros(hidden_size)
    g2, be2 = ones(hidden_size), zeros(hidden_size)
    g3, be3 = ones(output_size), zeros(output_size)

    # ---- kernel-side packed / padded copies -------------------------------
    P = _round_up(max(hidden_size, output_size), LANES)      # lane-dense width
    Kin = _round_up(input_size, SUBLANE_BF16)                 # fc1 true K (bf16 tile)

    def pad_w(w, rows, cols):
        out = jnp.zeros((rows, cols), jnp.bfloat16)
        return out.at[: w.shape[0], : w.shape[1]].set(w.astype(jnp.bfloat16))

    w1p = pad_w(w1, Kin, P)
    w2p = pad_w(w2, P, P)
    w3p = pad_w(w3, P, P)

    gbp = jnp.zeros((6, P), jnp.float32)
    for i, row in enumerate((g1, be1, g2, be2, g3, be3)):
        gbp = gbp.at[i, : row.shape[1]].set(row[0])

    return dict(
        # f32 logical params (reference / "PyTorch" view)
        w1=w1, b1=b1, g1=g1, be1=be1,
        w2=w2, b2=b2, g2=g2, be2=be2,
        w3=w3, b3=b3, g3=g3, be3=be3,
        # packed, padded kernel params
        w1p=w1p, w2p=w2p, w3p=w3p, gbp=gbp,
        P=P, Kin=Kin, out_size=output_size,
    )


# --------------------------------------------------------------------------
# Pure-JAX reference of the PyTorch forward (training-mode BN, f32, with bias)
# --------------------------------------------------------------------------
def _reference(x, p):
    def bn(h, g, b):
        m = jnp.mean(h, axis=0, keepdims=True)
        v = jnp.mean((h - m) ** 2, axis=0, keepdims=True)
        return (h - m) / jnp.sqrt(v + EPS) * g + b

    def lrelu(h):
        return jnp.where(h >= 0, h, NEG_SLOPE * h)

    h = lrelu(bn(x @ p["w1"] + p["b1"], p["g1"], p["be1"]))
    h = lrelu(bn(h @ p["w2"] + p["b2"], p["g2"], p["be2"]))
    h = bn(h @ p["w3"] + p["b3"], p["g3"], p["be3"])
    return jax.nn.sigmoid(h)


if __name__ == "__main__":
    B, INPUT, HIDDEN, OUTPUT = 8, 32, 32, 16

    key = jax.random.PRNGKey(0)
    kx, kp = jax.random.split(key)
    x = jax.random.normal(kx, (B, INPUT), jnp.float32)
    params = init_params(kp, INPUT, HIDDEN, OUTPUT)

    out = jax.block_until_ready(dnn_forward(x, params))
    ref = _reference(x, params)

    assert out.shape == (B, OUTPUT)
    # Residual error is only from bf16 matmul operands (exact-EUP tanh sigmoid,
    # f32 BN), so tolerance is tighter than the previous approx-recip version.
    assert jnp.allclose(out, ref, atol=1e-2, rtol=1e-2), "mismatch vs reference"

    # TODO(synk): BatchNorm1d running_mean/running_var side-effect updates are
    # not computed (they do not affect the training-mode forward output).
    print("KERNEL_OK")
</pallas_src>

<mosaic_0001>
module attributes {stable_mosaic.version = 11 : i64} {
  func.func @dnn_kernel(%arg0: memref<8x32xf32, #tpu.memory_space<vmem>>, %arg1: memref<32x128xbf16, #tpu.memory_space<vmem>>, %arg2: memref<128x128xbf16, #tpu.memory_space<vmem>>, %arg3: memref<128x128xbf16, #tpu.memory_space<vmem>>, %arg4: memref<6x128xf32, #tpu.memory_space<vmem>>, %arg5: memref<8x128xf32, #tpu.memory_space<vmem>>) attributes {dimension_semantics = [], scalar_prefetch = 0 : i64, scratch_operands = 0 : i64, tpu.core_type = #tpu.core_type<tc>} {
    %c0 = arith.constant 0 : index
    %c0_0 = arith.constant 0 : index
    %0 = vector.load %arg4[%c0, %c0_0] : memref<6x128xf32, #tpu.memory_space<vmem>>, vector<6x128xf32>
    %c0_1 = arith.constant 0 : index
    %c0_2 = arith.constant 0 : index
    %1 = vector.load %arg0[%c0_1, %c0_2] : memref<8x32xf32, #tpu.memory_space<vmem>>, vector<8x32xf32>
    %2 = arith.truncf %1 : vector<8x32xf32> to vector<8x32xbf16>
    %c0_3 = arith.constant 0 : index
    %c0_4 = arith.constant 0 : index
    %3 = vector.load %arg1[%c0_3, %c0_4] : memref<32x128xbf16, #tpu.memory_space<vmem>>, vector<32x128xbf16>
    %cst = arith.constant dense<0.000000e+00> : vector<8x128xf32>
    %4 = tpu.matmul %2, %3, %cst {dimension_numbers = #tpu.dot_dimension_numbers<[1], [0], [0], [1], [0, 0, 1, 1], [], []>} : vector<8x32xbf16>, vector<32x128xbf16>, vector<8x128xf32> -> vector<8x128xf32>
    %5 = vector.extract_strided_slice %0 {offsets = [0, 0], sizes = [1, 128], strides = [1, 1]} : vector<6x128xf32> to vector<1x128xf32>
    %6 = vector.extract_strided_slice %0 {offsets = [1, 0], sizes = [1, 128], strides = [1, 1]} : vector<6x128xf32> to vector<1x128xf32>
    %cst_5 = arith.constant dense<0.000000e+00> : vector<128xf32>
    %7 = vector.multi_reduction <add>, %4, %cst_5 [0] : vector<8x128xf32> to vector<128xf32>
    %8 = vector.shape_cast %7 : vector<128xf32> to vector<1x128xf32>
    %cst_6 = arith.constant 1.250000e-01 : f32
    %9 = vector.broadcast %cst_6 : f32 to vector<1x128xf32>
    %10 = arith.mulf %8, %9 : vector<1x128xf32>
    %11 = arith.mulf %4, %4 : vector<8x128xf32>
    %cst_7 = arith.constant dense<0.000000e+00> : vector<128xf32>
    %12 = vector.multi_reduction <add>, %11, %cst_7 [0] : vector<8x128xf32> to vector<128xf32>
    %13 = vector.shape_cast %12 : vector<128xf32> to vector<1x128xf32>
    %cst_8 = arith.constant 1.250000e-01 : f32
    %14 = vector.broadcast %cst_8 : f32 to vector<1x128xf32>
    %15 = arith.mulf %13, %14 : vector<1x128xf32>
    %16 = arith.mulf %10, %10 : vector<1x128xf32>
    %17 = arith.subf %15, %16 : vector<1x128xf32>
    %cst_9 = arith.constant 0.000000e+00 : f32
    %18 = vector.broadcast %cst_9 : f32 to vector<1x128xf32>
    %19 = arith.maximumf %17, %18 : vector<1x128xf32>
    %cst_10 = arith.constant 9.99999974E-6 : f32
    %20 = vector.broadcast %cst_10 : f32 to vector<1x128xf32>
    %21 = arith.addf %19, %20 : vector<1x128xf32>
    %22 = math.rsqrt %21 : vector<1x128xf32>
    %23 = arith.mulf %5, %22 : vector<1x128xf32>
    %24 = arith.mulf %10, %23 : vector<1x128xf32>
    %25 = arith.subf %6, %24 : vector<1x128xf32>
    %26 = vector.broadcast %23 : vector<1x128xf32> to vector<8x128xf32>
    %27 = arith.mulf %4, %26 : vector<8x128xf32>
    %28 = vector.broadcast %25 : vector<1x128xf32> to vector<8x128xf32>
    %29 = arith.addf %27, %28 : vector<8x128xf32>
    %cst_11 = arith.constant 0.000000e+00 : f32
    %30 = vector.broadcast %cst_11 : f32 to vector<8x128xf32>
    %31 = arith.cmpf oge, %29, %30 : vector<8x128xf32>
    %cst_12 = arith.constant 0.00999999977 : f32
    %32 = vector.broadcast %cst_12 : f32 to vector<8x128xf32>
    %33 = arith.mulf %32, %29 : vector<8x128xf32>
    %34 = arith.select %31, %29, %33 : vector<8x128xi1>, vector<8x128xf32>
    %35 = arith.truncf %34 : vector<8x128xf32> to vector<8x128xbf16>
    %c0_13 = arith.constant 0 : index
    %c0_14 = arith.constant 0 : index
    %36 = vector.load %arg2[%c0_13, %c0_14] : memref<128x128xbf16, #tpu.memory_space<vmem>>, vector<128x128xbf16>
    %cst_15 = arith.constant dense<0.000000e+00> : vector<8x128xf32>
    %37 = tpu.matmul %35, %36, %cst_15 {dimension_numbers = #tpu.dot_dimension_numbers<[1], [0], [0], [1], [0, 0, 1, 1], [], []>} : vector<8x128xbf16>, vector<128x128xbf16>, vector<8x128xf32> -> vector<8x128xf32>
    %38 = vector.extract_strided_slice %0 {offsets = [2, 0], sizes = [1, 128], strides = [1, 1]} : vector<6x128xf32> to vector<1x128xf32>
    %39 = vector.extract_strided_slice %0 {offsets = [3, 0], sizes = [1, 128], strides = [1, 1]} : vector<6x128xf32> to vector<1x128xf32>
    %cst_16 = arith.constant dense<0.000000e+00> : vector<128xf32>
    %40 = vector.multi_reduction <add>, %37, %cst_16 [0] : vector<8x128xf32> to vector<128xf32>
    %41 = vector.shape_cast %40 : vector<128xf32> to vector<1x128xf32>
    %cst_17 = arith.constant 1.250000e-01 : f32
    %42 = vector.broadcast %cst_17 : f32 to vector<1x128xf32>
    %43 = arith.mulf %41, %42 : vector<1x128xf32>
    %44 = arith.mulf %37, %37 : vector<8x128xf32>
    %cst_18 = arith.constant dense<0.000000e+00> : vector<128xf32>
    %45 = vector.multi_reduction <add>, %44, %cst_18 [0] : vector<8x128xf32> to vector<128xf32>
    %46 = vector.shape_cast %45 : vector<128xf32> to vector<1x128xf32>
    %cst_19 = arith.constant 1.250000e-01 : f32
    %47 = vector.broadcast %cst_19 : f32 to vector<1x128xf32>
    %48 = arith.mulf %46, %47 : vector<1x128xf32>
    %49 = arith.mulf %43, %43 : vector<1x128xf32>
    %50 = arith.subf %48, %49 : vector<1x128xf32>
    %cst_20 = arith.constant 0.000000e+00 : f32
    %51 = vector.broadcast %cst_20 : f32 to vector<1x128xf32>
    %52 = arith.maximumf %50, %51 : vector<1x128xf32>
    %cst_21 = arith.constant 9.99999974E-6 : f32
    %53 = vector.broadcast %cst_21 : f32 to vector<1x128xf32>
    %54 = arith.addf %52, %53 : vector<1x128xf32>
    %55 = math.rsqrt %54 : vector<1x128xf32>
    %56 = arith.mulf %38, %55 : vector<1x128xf32>
    %57 = arith.mulf %43, %56 : vector<1x128xf32>
    %58 = arith.subf %39, %57 : vector<1x128xf32>
    %59 = vector.broadcast %56 : vector<1x128xf32> to vector<8x128xf32>
    %60 = arith.mulf %37, %59 : vector<8x128xf32>
    %61 = vector.broadcast %58 : vector<1x128xf32> to vector<8x128xf32>
    %62 = arith.addf %60, %61 : vector<8x128xf32>
    %cst_22 = arith.constant 0.000000e+00 : f32
    %63 = vector.broadcast %cst_22 : f32 to vector<8x128xf32>
    %64 = arith.cmpf oge, %62, %63 : vector<8x128xf32>
    %cst_23 = arith.constant 0.00999999977 : f32
    %65 = vector.broadcast %cst_23 : f32 to vector<8x128xf32>
    %66 = arith.mulf %65, %62 : vector<8x128xf32>
    %67 = arith.select %64, %62, %66 : vector<8x128xi1>, vector<8x128xf32>
    %68 = arith.truncf %67 : vector<8x128xf32> to vector<8x128xbf16>
    %c0_24 = arith.constant 0 : index
    %c0_25 = arith.constant 0 : index
    %69 = vector.load %arg3[%c0_24, %c0_25] : memref<128x128xbf16, #tpu.memory_space<vmem>>, vector<128x128xbf16>
    %cst_26 = arith.constant dense<0.000000e+00> : vector<8x128xf32>
    %70 = tpu.matmul %68, %69, %cst_26 {dimension_numbers = #tpu.dot_dimension_numbers<[1], [0], [0], [1], [0, 0, 1, 1], [], []>} : vector<8x128xbf16>, vector<128x128xbf16>, vector<8x128xf32> -> vector<8x128xf32>
    %71 = vector.extract_strided_slice %0 {offsets = [4, 0], sizes = [1, 128], strides = [1, 1]} : vector<6x128xf32> to vector<1x128xf32>
    %72 = vector.extract_strided_slice %0 {offsets = [5, 0], sizes = [1, 128], strides = [1, 1]} : vector<6x128xf32> to vector<1x128xf32>
    %cst_27 = arith.constant dense<0.000000e+00> : vector<128xf32>
    %73 = vector.multi_reduction <add>, %70, %cst_27 [0] : vector<8x128xf32> to vector<128xf32>
    %74 = vector.shape_cast %73 : vector<128xf32> to vector<1x128xf32>
    %cst_28 = arith.constant 1.250000e-01 : f32
    %75 = vector.broadcast %cst_28 : f32 to vector<1x128xf32>
    %76 = arith.mulf %74, %75 : vector<1x128xf32>
    %77 = arith.mulf %70, %70 : vector<8x128xf32>
    %cst_29 = arith.constant dense<0.000000e+00> : vector<128xf32>
    %78 = vector.multi_reduction <add>, %77, %cst_29 [0] : vector<8x128xf32> to vector<128xf32>
    %79 = vector.shape_cast %78 : vector<128xf32> to vector<1x128xf32>
    %cst_30 = arith.constant 1.250000e-01 : f32
    %80 = vector.broadcast %cst_30 : f32 to vector<1x128xf32>
    %81 = arith.mulf %79, %80 : vector<1x128xf32>
    %82 = arith.mulf %76, %76 : vector<1x128xf32>
    %83 = arith.subf %81, %82 : vector<1x128xf32>
    %cst_31 = arith.constant 0.000000e+00 : f32
    %84 = vector.broadcast %cst_31 : f32 to vector<1x128xf32>
    %85 = arith.maximumf %83, %84 : vector<1x128xf32>
    %cst_32 = arith.constant 9.99999974E-6 : f32
    %86 = vector.broadcast %cst_32 : f32 to vector<1x128xf32>
    %87 = arith.addf %85, %86 : vector<1x128xf32>
    %88 = math.rsqrt %87 : vector<1x128xf32>
    %89 = arith.mulf %71, %88 : vector<1x128xf32>
    %90 = arith.mulf %76, %89 : vector<1x128xf32>
    %91 = arith.subf %72, %90 : vector<1x128xf32>
    %92 = vector.broadcast %89 : vector<1x128xf32> to vector<8x128xf32>
    %93 = arith.mulf %70, %92 : vector<8x128xf32>
    %94 = vector.broadcast %91 : vector<1x128xf32> to vector<8x128xf32>
    %95 = arith.addf %93, %94 : vector<8x128xf32>
    %cst_33 = arith.constant 5.000000e-01 : f32
    %96 = vector.broadcast %cst_33 : f32 to vector<8x128xf32>
    %97 = arith.mulf %96, %95 : vector<8x128xf32>
    %98 = math.tanh %97 : vector<8x128xf32>
    %cst_34 = arith.constant 1.000000e+00 : f32
    %99 = vector.broadcast %cst_34 : f32 to vector<8x128xf32>
    %100 = arith.addf %98, %99 : vector<8x128xf32>
    %cst_35 = arith.constant 5.000000e-01 : f32
    %101 = vector.broadcast %cst_35 : f32 to vector<8x128xf32>
    %102 = arith.mulf %101, %100 : vector<8x128xf32>
    %c0_36 = arith.constant 0 : index
    %c0_37 = arith.constant 0 : index
    %103 = vector.load %arg5[%c0_36, %c0_37] : memref<8x128xf32, #tpu.memory_space<vmem>>, vector<8x128xf32>
    tpu.vector_store %arg5[%c0_36, %c0_37], %102 {strides = array<i32>} : memref<8x128xf32, #tpu.memory_space<vmem>>, vector<8x128xf32>,
    return
  }
}

</mosaic_0001>

<llo_original>
// kernel: _forward_jit.1
$region0: #{_forward_jit.1}
  #allocation0 [shape = 'u32[]', space=smem, size = 0x4, offset = 0x4, fixed_abs, tag = 'smem constant byte address 0x4 - core index']
  #allocation1 [shape = 'u32[72,128]{1,0:T(1,128)}', space=vmem, size = 0x9000, scoped, tag = 'internal scratch']
  %s0 = inlined_call_operand.hbm [shape: f32[8,32], index: 0, kind: input, shape index: {}]
  %s1 = inlined_call_operand.hbm [shape: bf16[32,128], index: 1, kind: input, shape index: {}]
  %s2 = inlined_call_operand.hbm [shape: bf16[128,128], index: 2, kind: input, shape index: {}]
  %s3 = inlined_call_operand.hbm [shape: bf16[128,128], index: 3, kind: input, shape index: {}]
  %s4 = inlined_call_operand.hbm [shape: f32[6,128], index: 4, kind: input, shape index: {}]
  %s5 = inlined_call_operand.hbm [shape: f32[8,128], index: 5, kind: output, shape index: {}]
  %s6 = sld [smem:[#allocation0]]
  $region50: #{_forward_jit.1} parent=0
    _
  %s8 = ssub.s32 1, %s6
  %s9 = scalar_select 0, %s8, %s6
  $region1: #{_forward_jit.1} parent=0
    #allocation2 [shape = 'u8[4096]{0}', space=vmem, size = 0x1000, scoped, tag = 'input window, operand 0, single buffered']
    #allocation3 [shape = 's32[1]{0}', space=sflag, size = 0x4, scoped, tag = 'scoped memory for _forward_jit.1']
    #allocation4 [shape = 's32[1]{0}', space=sflag, size = 0x4, scoped, tag = 'scoped memory for _forward_jit.1']
    #allocation5 [shape = 'u8[8192]{0}', space=vmem, size = 0x2000, scoped, tag = 'input window, operand 1, single buffered']
    #allocation6 [shape = 's32[1]{0}', space=sflag, size = 0x4, scoped, tag = 'scoped memory for _forward_jit.1']
    #allocation7 [shape = 'u8[32768]{0}', space=vmem, size = 0x8000, scoped, tag = 'input window, operand 2, single buffered']
    #allocation8 [shape = 'u8[32768]{0}', space=vmem, size = 0x8000, scoped, tag = 'input window, operand 3, single buffered']
    #allocation9 [shape = 's32[1]{0}', space=sflag, size = 0x4, scoped, tag = 'scoped memory for _forward_jit.1']
    #allocation10 [shape = 'u8[4096]{0}', space=vmem, size = 0x1000, scoped, tag = 'input window, operand 4, single buffered']
    #allocation11 [shape = 'u8[4096]{0}', space=vmem, size = 0x1000, scoped, tag = 'output window, operand 0, single buffered']
    %10 = vsyncpa [#allocation3], 0
    %11 = vsyncpa [#allocation6], 0
    %12 = vsyncpa [#allocation9], 0
    %13 = vsyncpa [#allocation4], 0
    // Predicated region
    $region2: #{_forward_jit.1} parent=1 // pred_check
      _
    $region3: #{_forward_jit.1} parent=1 // pred_check_branch
      %15 = sbr.rel (0) target = $region5
    $region4: #{_forward_jit.1} parent=1 // pred_region
      %17 = vsyncadd [#allocation3], 0
      %s19 = sshll.u32 %s0, 4
      %s20 = int_to_ptr.hbm [resolvable:$true] %s19
      %s21 = sshll.u32 [#allocation2], 4
      %s22 = int_to_ptr.vmem [resolvable:$true] %s21
      %24 = dma.hbm_to_vmem [thread:$0]  %s20, 128, %s22, [#allocation3]
    $region5: #{_forward_jit.1} parent=1 // pred_fallthru
      _
    // Predicated region
    $region6: #{_forward_jit.1} parent=1 // pred_check
      _
    $region7: #{_forward_jit.1} parent=1 // pred_check_branch
      %26 = sbr.rel (0) target = $region9
    $region8: #{_forward_jit.1} parent=1 // pred_region
      %28 = vsyncadd [#allocation6], 0
      %s29 = sshll.u32 %s1, 4
      %s30 = int_to_ptr.hbm [resolvable:$true] %s29
      %s31 = sshll.u32 [#allocation5], 4
      %s32 = int_to_ptr.vmem [resolvable:$true] %s31
      %37 = dma.hbm_to_vmem [thread:$0]  %s30, 256, %s32, [#allocation6], 64, 64, 4
    $region9: #{_forward_jit.1} parent=1 // pred_fallthru
      _
    // Predicated region
    $region10: #{_forward_jit.1} parent=1 // pred_check
      _
    $region11: #{_forward_jit.1} parent=1 // pred_check_branch
      %39 = sbr.rel (0) target = $region13
    $region12: #{_forward_jit.1} parent=1 // pred_region
      %41 = vsyncadd [#allocation6], 0
      %s42 = sshll.u32 %s2, 4
      %s43 = int_to_ptr.hbm [resolvable:$true] %s42
      %s44 = sshll.u32 [#allocation7], 4
      %s45 = int_to_ptr.vmem [resolvable:$true] %s44
      %50 = dma.hbm_to_vmem [thread:$0]  %s43, 1024, %s45, [#allocation6], 64, 64, 4
    $region13: #{_forward_jit.1} parent=1 // pred_fallthru
      _
    // Predicated region
    $region14: #{_forward_jit.1} parent=1 // pred_check
      _
    $region15: #{_forward_jit.1} parent=1 // pred_check_branch
      %52 = sbr.rel (0) target = $region17
    $region16: #{_forward_jit.1} parent=1 // pred_region
      %54 = vsyncadd [#allocation9], 0
      %s55 = sshll.u32 %s3, 4
      %s56 = int_to_ptr.hbm [resolvable:$true] %s55
      %s57 = sshll.u32 [#allocation8], 4
      %s58 = int_to_ptr.vmem [resolvable:$true] %s57
      %63 = dma.hbm_to_vmem [thread:$0]  %s56, 1024, %s58, [#allocation9], 64, 64, 4
    $region17: #{_forward_jit.1} parent=1 // pred_fallthru
      _
    // Predicated region
    $region18: #{_forward_jit.1} parent=1 // pred_check
      _
    $region19: #{_forward_jit.1} parent=1 // pred_check_branch
      %65 = sbr.rel (0) target = $region21
    $region20: #{_forward_jit.1} parent=1 // pred_region
      %67 = vsyncadd [#allocation9], 0
      %s69 = sshll.u32 %s4, 4
      %s70 = int_to_ptr.hbm [resolvable:$true] %s69
      %s71 = sshll.u32 [#allocation10], 4
      %s72 = int_to_ptr.vmem [resolvable:$true] %s71
      %74 = dma.hbm_to_vmem [thread:$0]  %s70, 128, %s72, [#allocation9]
    $region21: #{_forward_jit.1} parent=1 // pred_fallthru
      _
    // Predicated region
    $region22: #{_forward_jit.1} parent=1 // pred_check
      _
    $region23: #{_forward_jit.1} parent=1 // pred_check_branch
      %76 = sbr.rel (0) target = $region25
    $region24: #{_forward_jit.1} parent=1 // pred_region
      %78 = dma.done [#allocation3], 128
    $region25: #{_forward_jit.1} parent=1 // pred_fallthru
      _
    // Predicated region
    $region26: #{_forward_jit.1} parent=1 // pred_check
      _
    $region27: #{_forward_jit.1} parent=1 // pred_check_branch
      %80 = sbr.rel (0) target = $region29
    $region28: #{_forward_jit.1} parent=1 // pred_region
      %82 = dma.done [#allocation6], 256
    $region29: #{_forward_jit.1} parent=1 // pred_fallthru
      _
    // Predicated region
    $region30: #{_forward_jit.1} parent=1 // pred_check
      _
    $region31: #{_forward_jit.1} parent=1 // pred_check_branch
      %84 = sbr.rel (0) target = $region33
    $region32: #{_forward_jit.1} parent=1 // pred_region
      %86 = dma.done [#allocation6], 1024
    $region33: #{_forward_jit.1} parent=1 // pred_fallthru
      _
    // Predicated region
    $region34: #{_forward_jit.1} parent=1 // pred_check
      _
    $region35: #{_forward_jit.1} parent=1 // pred_check_branch
      %88 = sbr.rel (0) target = $region37
    $region36: #{_forward_jit.1} parent=1 // pred_region
      %90 = dma.done [#allocation9], 1024
    $region37: #{_forward_jit.1} parent=1 // pred_fallthru
      _
    // Predicated region
    $region38: #{_forward_jit.1} parent=1 // pred_check
      _
    $region39: #{_forward_jit.1} parent=1 // pred_check_branch
      %92 = sbr.rel (0) target = $region41
    $region40: #{_forward_jit.1} parent=1 // pred_region
      %94 = dma.done [#allocation9], 128
    $region41: #{_forward_jit.1} parent=1 // pred_fallthru
      _
    %v96 = vld [vmem:[#allocation10] sm:$0x3f]
    %v97 = vld [vmem:[#allocation2] sm:$0xff]
    %v98 = vpack.c.bf16 %v97, %v97
    %v99 = vld [vmem:[#allocation5] sm:$0xf]
    %v100 = vld [vmem:[#allocation5 + $0x4] sm:$0xf]
    %v101 = vld [vmem:[#allocation5 + $0x8] sm:$0xf]
    %v102 = vld [vmem:[#allocation5 + $0xc] sm:$0xf]
    %v107 = vunpack.c.l.b16 %v99
    %v108 = vunpack.c.l.b16 %v100
    %v109 = vunpack.c.l.b16 %v101
    %v110 = vunpack.c.l.b16 %v102
    %v111 = vpack.c.b16 %v108, %v107
    %v112 = vpack.c.b16 %v110, %v109
    %vm115 = vcmask 261120
    %v117 = vsel %vm115, %v98, 0
    %119 = vmatpush.bf16.msra.mxu0 0
    %120 = vmatpush.bf16.msra.mxu0 0
    %121 = vmatpush.bf16.msra.mxu0 0
    %122 = vmatpush.bf16.msra.mxu0 0
    %123 = vmatpush.bf16.msra.mxu0 0
    %124 = vmatpush.bf16.msra.mxu0 0
    %125 = vmatpush.bf16.msra.mxu0 %v112
    %126 = vmatpush.bf16.msra.mxu0 %v111
    %127 = vmatmul.bf16.gmra.mxu0 %v117
    %v128 = vpop.f32.mrf.mxu0
    %v129 = vadd.f32 0.0, %v128
    %v130 = vpop.f32.mrf.mxu0
    %131 = vdwg.mxu0
    %v132 = vrot.slane %v129, 4
    %v133 = vadd.f32 %v129, %v132
    %v134 = vrot.slane %v133, 2
    %v135 = vadd.f32 %v133, %v134
    %v136 = vrot.slane %v135, 1
    %v137 = vadd.f32 %v135, %v136
    %v138 = vmul.f32 %v137, 0.125
    %v139 = vmul.f32 %v129, %v129
    %v140 = vrot.slane %v139, 4
    %v141 = vadd.f32 %v139, %v140
    %v142 = vrot.slane %v141, 2
    %v143 = vadd.f32 %v141, %v142
    %v144 = vrot.slane %v143, 1
    %v145 = vadd.f32 %v143, %v144
    %v146 = vmul.f32 %v145, 0.125
    %v147 = vmul.f32 %v138, %v138
    %v148 = vsub.f32 %v146, %v147
    %v149 = vmax.f32 %v148, 0.0
    %v150 = vadd.f32 %v149, 1e-05
    %v151 = vrsqrt.pop %v150
    %v152 = vmul.f32 %v151, %v150
    %v153 = vmul.f32 %v152, %v151
    %v154 = vmul.f32 0.5, %v153
    %v155 = vsub.f32 1.5, %v154
    %v156 = vmul.f32 %v151, %v155
    %vm157 = vweird.f32 %v150
    %vm158 = vweird.f32 %v151
    %vm159 = vmor %vm157, %vm158
    %v160 = vsel %vm159, %v151, %v156
    %v161 = vmul.f32 %v96, %v160
    %v162 = vmul.f32 %v138, %v161
    %v164 = vrot.slane %v162, 7
    %v166 = vsub.f32 %v96, %v164
    %v167 = vperm.slane %v161, 0
    %v168 = vmul.f32 %v129, %v167
    %v169 = vperm.slane %v166, 1
    %v170 = vadd.f32 %v168, %v169
    %vm171 = vcmp.ge.f32.partialorder %v170, 0.0
    %v172 = vmul.f32 %v170, 0.01
    %v173 = vsel %vm171, %v170, %v172
    %v174 = vpack.c.bf16 %v173, %v173
    %v175 = vld [vmem:[#allocation7] sm:$0xf]
    %v176 = vld [vmem:[#allocation7 + $0x4] sm:$0xf]
    %v177 = vld [vmem:[#allocation7 + $0x8] sm:$0xf]
    %v178 = vld [vmem:[#allocation7 + $0xc] sm:$0xf]
    %v179 = vld [vmem:[#allocation7 + $0x10] sm:$0xf]
    %v180 = vld [vmem:[#allocation7 + $0x14] sm:$0xf]
    %v181 = vld [vmem:[#allocation7 + $0x18] sm:$0xf]
    %v182 = vld [vmem:[#allocation7 + $0x1c] sm:$0xf]
    %v183 = vld [vmem:[#allocation7 + $0x20] sm:$0xf]
    %v184 = vld [vmem:[#allocation7 + $0x24] sm:$0xf]
    %v185 = vld [vmem:[#allocation7 + $0x28] sm:$0xf]
    %v186 = vld [vmem:[#allocation7 + $0x2c] sm:$0xf]
    %v187 = vld [vmem:[#allocation7 + $0x30] sm:$0xf]
    %v188 = vld [vmem:[#allocation7 + $0x34] sm:$0xf]
    %v189 = vld [vmem:[#allocation7 + $0x38] sm:$0xf]
    %v190 = vld [vmem:[#allocation7 + $0x3c] sm:$0xf]
    %v207 = vunpack.c.l.b16 %v175
    %v208 = vunpack.c.l.b16 %v176
    %v209 = vunpack.c.l.b16 %v177
    %v210 = vunpack.c.l.b16 %v178
    %v211 = vunpack.c.l.b16 %v179
    %v212 = vunpack.c.l.b16 %v180
    %v213 = vunpack.c.l.b16 %v181
    %v214 = vunpack.c.l.b16 %v182
    %v215 = vunpack.c.l.b16 %v183
    %v216 = vunpack.c.l.b16 %v184
    %v217 = vunpack.c.l.b16 %v185
    %v218 = vunpack.c.l.b16 %v186
    %v219 = vunpack.c.l.b16 %v187
    %v220 = vunpack.c.l.b16 %v188
    %v221 = vunpack.c.l.b16 %v189
    %v222 = vunpack.c.l.b16 %v190
    %v223 = vpack.c.b16 %v208, %v207
    %v224 = vpack.c.b16 %v210, %v209
    %v225 = vpack.c.b16 %v212, %v211
    %v226 = vpack.c.b16 %v214, %v213
    %v227 = vpack.c.b16 %v216, %v215
    %v228 = vpack.c.b16 %v218, %v217
    %v229 = vpack.c.b16 %v220, %v219
    %v230 = vpack.c.b16 %v222, %v221
    %239 = vmatpush.bf16.msra.mxu0 %v230
    %240 = vmatpush.bf16.msra.mxu0 %v229
    %241 = vmatpush.bf16.msra.mxu0 %v228
    %242 = vmatpush.bf16.msra.mxu0 %v227
    %243 = vmatpush.bf16.msra.mxu0 %v226
    %244 = vmatpush.bf16.msra.mxu0 %v225
    %245 = vmatpush.bf16.msra.mxu0 %v224
    %246 = vmatpush.bf16.msra.mxu0 %v223
    %247 = vmatmul.bf16.gmra.mxu0 %v174
    %v248 = vpop.f32.mrf.mxu0
    %v249 = vadd.f32 0.0, %v248
    %v250 = vpop.f32.mrf.mxu0
    %251 = vdwg.mxu0
    %v252 = vrot.slane %v249, 4
    %v253 = vadd.f32 %v249, %v252
    %v254 = vrot.slane %v253, 2
    %v255 = vadd.f32 %v253, %v254
    %v256 = vrot.slane %v255, 1
    %v257 = vadd.f32 %v255, %v256
    %v258 = vmul.f32 %v257, 0.125
    %v259 = vmul.f32 %v249, %v249
    %v260 = vrot.slane %v259, 4
    %v261 = vadd.f32 %v259, %v260
    %v262 = vrot.slane %v261, 2
    %v263 = vadd.f32 %v261, %v262
    %v264 = vrot.slane %v263, 1
    %v265 = vadd.f32 %v263, %v264
    %v266 = vmul.f32 %v265, 0.125
    %v267 = vmul.f32 %v258, %v258
    %v268 = vsub.f32 %v266, %v267
    %v269 = vmax.f32 %v268, 0.0
    %v270 = vadd.f32 %v269, 1e-05
    %v271 = vrsqrt.pop %v270
    %v272 = vmul.f32 %v271, %v270
    %v273 = vmul.f32 %v272, %v271
    %v274 = vmul.f32 0.5, %v273
    %v275 = vsub.f32 1.5, %v274
    %v276 = vmul.f32 %v271, %v275
    %vm277 = vweird.f32 %v270
    %vm278 = vweird.f32 %v271
    %vm279 = vmor %vm277, %vm278
    %v280 = vsel %vm279, %v271, %v276
    %v281 = vmul.f32 %v96, %v280
    %v282 = vmul.f32 %v258, %v281
    %v284 = vrot.slane %v282, 7
    %v286 = vsub.f32 %v96, %v284
    %v287 = vperm.slane %v281, 2
    %v288 = vmul.f32 %v249, %v287
    %v289 = vperm.slane %v286, 3
    %v290 = vadd.f32 %v288, %v289
    %vm291 = vcmp.ge.f32.partialorder %v290, 0.0
    %v292 = vmul.f32 %v290, 0.01
    %v293 = vsel %vm291, %v290, %v292
    %v294 = vpack.c.bf16 %v293, %v293
    %v295 = vld [vmem:[#allocation8] sm:$0xf]
    %v296 = vld [vmem:[#allocation8 + $0x4] sm:$0xf]
    %v297 = vld [vmem:[#allocation8 + $0x8] sm:$0xf]
    %v298 = vld [vmem:[#allocation8 + $0xc] sm:$0xf]
    %v299 = vld [vmem:[#allocation8 + $0x10] sm:$0xf]
    %v300 = vld [vmem:[#allocation8 + $0x14] sm:$0xf]
    %v301 = vld [vmem:[#allocation8 + $0x18] sm:$0xf]
    %v302 = vld [vmem:[#allocation8 + $0x1c] sm:$0xf]
    %v303 = vld [vmem:[#allocation8 + $0x20] sm:$0xf]
    %v304 = vld [vmem:[#allocation8 + $0x24] sm:$0xf]
    %v305 = vld [vmem:[#allocation8 + $0x28] sm:$0xf]
    %v306 = vld [vmem:[#allocation8 + $0x2c] sm:$0xf]
    %v307 = vld [vmem:[#allocation8 + $0x30] sm:$0xf]
    %v308 = vld [vmem:[#allocation8 + $0x34] sm:$0xf]
    %v309 = vld [vmem:[#allocation8 + $0x38] sm:$0xf]
    %v310 = vld [vmem:[#allocation8 + $0x3c] sm:$0xf]
    %v327 = vunpack.c.l.b16 %v295
    %v328 = vunpack.c.l.b16 %v296
    %v329 = vunpack.c.l.b16 %v297
    %v330 = vunpack.c.l.b16 %v298
    %v331 = vunpack.c.l.b16 %v299
    %v332 = vunpack.c.l.b16 %v300
    %v333 = vunpack.c.l.b16 %v301
    %v334 = vunpack.c.l.b16 %v302
    %v335 = vunpack.c.l.b16 %v303
    %v336 = vunpack.c.l.b16 %v304
    %v337 = vunpack.c.l.b16 %v305
    %v338 = vunpack.c.l.b16 %v306
    %v339 = vunpack.c.l.b16 %v307
    %v340 = vunpack.c.l.b16 %v308
    %v341 = vunpack.c.l.b16 %v309
    %v342 = vunpack.c.l.b16 %v310
    %v343 = vpack.c.b16 %v328, %v327
    %v344 = vpack.c.b16 %v330, %v329
    %v345 = vpack.c.b16 %v332, %v331
    %v346 = vpack.c.b16 %v334, %v333
    %v347 = vpack.c.b16 %v336, %v335
    %v348 = vpack.c.b16 %v338, %v337
    %v349 = vpack.c.b16 %v340, %v339
    %v350 = vpack.c.b16 %v342, %v341
    %359 = vmatpush.bf16.msra.mxu0 %v350
    %360 = vmatpush.bf16.msra.mxu0 %v349
    %361 = vmatpush.bf16.msra.mxu0 %v348
    %362 = vmatpush.bf16.msra.mxu0 %v347
    %363 = vmatpush.bf16.msra.mxu0 %v346
    %364 = vmatpush.bf16.msra.mxu0 %v345
    %365 = vmatpush.bf16.msra.mxu0 %v344
    %366 = vmatpush.bf16.msra.mxu0 %v343
    %367 = vmatmul.bf16.gmra.mxu0 %v294
    %v368 = vpop.f32.mrf.mxu0
    %v369 = vadd.f32 0.0, %v368
    %v370 = vpop.f32.mrf.mxu0
    %371 = vdwg.mxu0
    %v372 = vrot.slane %v369, 4
    %v373 = vadd.f32 %v369, %v372
    %v374 = vrot.slane %v373, 2
    %v375 = vadd.f32 %v373, %v374
    %v376 = vrot.slane %v375, 1
    %v377 = vadd.f32 %v375, %v376
    %v378 = vmul.f32 %v377, 0.125
    %v379 = vmul.f32 %v369, %v369
    %v380 = vrot.slane %v379, 4
    %v381 = vadd.f32 %v379, %v380
    %v382 = vrot.slane %v381, 2
    %v383 = vadd.f32 %v381, %v382
    %v384 = vrot.slane %v383, 1
    %v385 = vadd.f32 %v383, %v384
    %v386 = vmul.f32 %v385, 0.125
    %v387 = vmul.f32 %v378, %v378
    %v388 = vsub.f32 %v386, %v387
    %v389 = vmax.f32 %v388, 0.0
    %v390 = vadd.f32 %v389, 1e-05
    %v391 = vrsqrt.pop %v390
    %v392 = vmul.f32 %v391, %v390
    %v393 = vmul.f32 %v392, %v391
    %v394 = vmul.f32 0.5, %v393
    %v395 = vsub.f32 1.5, %v394
    %v396 = vmul.f32 %v391, %v395
    %vm397 = vweird.f32 %v390
    %vm398 = vweird.f32 %v391
    %vm399 = vmor %vm397, %vm398
    %v400 = vsel %vm399, %v391, %v396
    %v401 = vmul.f32 %v96, %v400
    %v402 = vmul.f32 %v378, %v401
    %v404 = vrot.slane %v402, 7
    %v406 = vsub.f32 %v96, %v404
    %v407 = vperm.slane %v401, 4
    %v408 = vmul.f32 %v369, %v407
    %v409 = vperm.slane %v406, 5
    %v410 = vadd.f32 %v408, %v409
    %v411 = vmul.f32 %v410, 0.5
    %v412 = vtanh.pop %v411
    %v413 = vadd.f32 %v412, 1.0
    %v414 = vmul.f32 %v413, 0.5
    %415 = vst [vmem:[#allocation11] sm:$0xff] %v414
    // Predicated region
    $region42: #{_forward_jit.1} parent=1 // pred_check
      _
    $region43: #{_forward_jit.1} parent=1 // pred_check_branch
      %417 = sbr.rel (0) target = $region45
    $region44: #{_forward_jit.1} parent=1 // pred_region
      %419 = vsyncadd [#allocation4], 0
      %s421 = sshll.u32 [#allocation11], 4
      %s422 = int_to_ptr.vmem [resolvable:$true] %s421
      %s423 = sshll.u32 %s5, 4
      %s424 = int_to_ptr.hbm [resolvable:$true] %s423
      %426 = dma.vmem_to_hbm [thread:$0]  %s422, 128, %s424, [#allocation4]
    $region45: #{_forward_jit.1} parent=1 // pred_fallthru
      _
    // Predicated region
    $region46: #{_forward_jit.1} parent=1 // pred_check
      _
    $region47: #{_forward_jit.1} parent=1 // pred_check_branch
      %428 = sbr.rel (0) target = $region49
    $region48: #{_forward_jit.1} parent=1 // pred_region
      %430 = dma.done [#allocation4], 128
    $region49: #{_forward_jit.1} parent=1 // pred_fallthru
      _
    %431 = vsyncpa [#allocation3], 1
    %432 = vsyncpa [#allocation6], 1
    %433 = vsyncpa [#allocation9], 1
    %434 = vsyncpa [#allocation4], 1

</llo_original>
